<compile_context>
chip_gen: v7x
topology: tpu7x:2x2x1
jax: 0.10.0
libtpu: 0.0.40
codegen_flags: <defaults>
</compile_context>

<pallas_src>
import functools
import math

import jax
import jax.numpy as jnp
from jax.experimental import pallas as pl
from jax.experimental.pallas import tpu as pltpu

EPS = 1e-6
MASK_VALUE = -1e30  # applied in f32


# --------------------------------------------------------------------------- #
# Generation-aware budgeting
# --------------------------------------------------------------------------- #
def _tpu_vmem_bytes():
    try:
        info = pltpu.get_tpu_info()
        cap = getattr(info, "vmem_capacity_bytes", None)
        if cap:
            return int(cap)
    except Exception:
        pass
    return 64 << 20  # conservative (v7x-class) fallback


_VMEM_BYTES = _tpu_vmem_bytes()
_VMEM_LIMIT = int(min(_VMEM_BYTES * 3 // 4, 100 << 20))
_BIG_VMEM = _VMEM_BYTES >= (96 << 20)          # 128 MiB-class (v5e/v6e) vs v7x
_ROW_TARGET = 512 if _BIG_VMEM else 256        # fewer row tiles => fewer weight streams
_COL_TARGET = 512 if _BIG_VMEM else 256


def _compiler_params(dims):
    return pltpu.CompilerParams(dimension_semantics=dims,
                                vmem_limit_bytes=_VMEM_LIMIT)


def _pick_tile(dim, target, align):
    """Aligned divisor of `dim` near `target` (prefer <= target, then the smallest
    aligned divisor above it) so unfriendly dims don't silently become one block."""
    if dim <= target:
        return dim
    t = (target // align) * align
    while t >= align:
        if dim % t == 0:
            return t
        t -= align
    t = (target // align + 1) * align
    while t < dim:
        if dim % t == 0:
            return t
        t += align
    return dim


def _rmsnorm_f32(x, gamma):
    ms = jnp.mean(x * x, axis=-1, keepdims=True)
    return x * jax.lax.rsqrt(ms + EPS) * gamma


# --------------------------------------------------------------------------- #
# Kernel 1: fused RMSNorm + QKV projection, emits q, k, v separately.
# 1/sqrt(H) folded into q.  Grid (row tiles, H tiles), both axes parallel.
# --------------------------------------------------------------------------- #
def _qkv_kernel(x_ref, ln_ref, wq_ref, wk_ref, wv_ref, q_ref, k_ref, v_ref,
                *, scale):
    x = x_ref[...].astype(jnp.float32)                              # (tm, H)
    xn = _rmsnorm_f32(x, ln_ref[...]).astype(jnp.bfloat16)
    q = jnp.dot(xn, wq_ref[...], preferred_element_type=jnp.float32)
    q_ref[...] = (q * scale).astype(q_ref.dtype)
    k_ref[...] = jnp.dot(xn, wk_ref[...],
                         preferred_element_type=jnp.float32).astype(k_ref.dtype)
    v_ref[...] = jnp.dot(xn, wv_ref[...],
                         preferred_element_type=jnp.float32).astype(v_ref.dtype)


def qkv_proj(x2d, ln_w, wq, wk, wv, *, scale):
    R, H = x2d.shape
    tm = _pick_tile(R, _ROW_TARGET, 16)
    tn = _pick_tile(H, _COL_TARGET, 128)
    kernel = functools.partial(_qkv_kernel, scale=scale)
    return pl.pallas_call(
        kernel,
        out_shape=tuple(jax.ShapeDtypeStruct((R, H), jnp.bfloat16) for _ in range(3)),
        grid=(R // tm, H // tn),
        in_specs=[
            pl.BlockSpec((tm, H), lambda r, n: (r, 0)),
            pl.BlockSpec((1, H), lambda r, n: (0, 0)),
            pl.BlockSpec((H, tn), lambda r, n: (0, n)),
            pl.BlockSpec((H, tn), lambda r, n: (0, n)),
            pl.BlockSpec((H, tn), lambda r, n: (0, n)),
        ],
        out_specs=tuple(pl.BlockSpec((tm, tn), lambda r, n: (r, n)) for _ in range(3)),
        compiler_params=_compiler_params(("parallel", "parallel")),
    )(x2d, ln_w.reshape(1, H), wq, wk, wv)


# --------------------------------------------------------------------------- #
# Kernel 2: flash attention (online softmax, causal) fused with the Wo output
# projection and residual add.  Grid = (B, lower-triangular pairs); qi/ki tables
# are scalar-prefetched so masked KV tiles are never fetched.  Emits attn_out
# (AttnWrapper hook) and x + attn_out.
# --------------------------------------------------------------------------- #
def _flash_block_kernel(qi_ref, ki_ref, q_ref, k_ref, v_ref, x_ref, wo_ref,
                        attn_out_ref, resid_ref, m_sc, l_sc, acc_sc,
                        *, tq, tkv, nk):
    t = pl.program_id(1)
    qi = qi_ref[t]
    ki = ki_ref[t]
    q_start = qi * tq
    kv_start = ki * tkv

    @pl.when(ki == 0)
    def _():
        m_sc[...] = jnp.full_like(m_sc, -jnp.inf)
        l_sc[...] = jnp.zeros_like(l_sc)
        acc_sc[...] = jnp.zeros_like(acc_sc)

    def update(apply_mask):
        q = q_ref[0]                                         # (tq, H)  pre-scaled bf16
        k = k_ref[0]                                         # (tkv, H)
        s = jax.lax.dot_general(q, k, (((1,), (1,)), ((), ())),
                                preferred_element_type=jnp.float32)   # (tq, tkv)
        if apply_mask:                                       # diagonal tiles only
            row = q_start + jax.lax.broadcasted_iota(jnp.int32, (tq, tkv), 0)
            col = kv_start + jax.lax.broadcasted_iota(jnp.int32, (tq, tkv), 1)
            s = jnp.where(col <= row, s, MASK_VALUE)
        m_prev = jnp.max(m_sc[...], axis=-1, keepdims=True)  # lanes hold equal values
        l_prev = jnp.max(l_sc[...], axis=-1, keepdims=True)
        m_new = jnp.maximum(m_prev, s.max(axis=-1, keepdims=True))
        alpha = jnp.exp(m_prev - m_new)
        p = jnp.exp(s - m_new)
        l_new = alpha * l_prev + p.sum(axis=-1, keepdims=True)
        acc_sc[...] = alpha * acc_sc[...] + jnp.dot(
            p.astype(jnp.bfloat16), v_ref[0], preferred_element_type=jnp.float32)
        m_sc[...] = jnp.broadcast_to(m_new, m_sc.shape)       # lane-dense stores
        l_sc[...] = jnp.broadcast_to(l_new, l_sc.shape)

    needs_mask = kv_start + (tkv - 1) > q_start

    @pl.when(needs_mask)
    def _():
        update(True)

    @pl.when(jnp.logical_not(needs_mask))
    def _():
        update(False)

    last_ki = jnp.minimum(nk - 1, (q_start + tq - 1) // tkv)

    @pl.when(ki == last_ki)
    def _():
        l = jnp.max(l_sc[...], axis=-1, keepdims=True)
        ctx = (acc_sc[...] / l).astype(jnp.bfloat16)          # exact divide
        o = jnp.dot(ctx, wo_ref[...], preferred_element_type=jnp.float32)
        attn_out_ref[0] = o.astype(attn_out_ref.dtype)
        resid_ref[0] = (o + x_ref[0].astype(jnp.float32)).astype(resid_ref.dtype)


def flash_attention_block(q, k, v, x, wo):
    """q,k,v,x: (B,S,H) bf16; wo: (H,H) bf16 -> (attn_out, x+attn_out), both (B,S,H)."""
    # TODO(synk): rotary position embeddings of the real LLaMA attention are omitted
    # in this synthetic block.
    B, S, H = q.shape
    tq = _pick_tile(S, _ROW_TARGET, 16)
    tkv = _pick_tile(S, _COL_TARGET, 128)
    nq, nk = S // tq, S // tkv
    pairs = [(qi, ki) for qi in range(nq) for ki in range(nk)
             if ki * tkv <= qi * tq + tq - 1]                 # lower-triangular only
    qi_tbl = jnp.asarray([p[0] for p in pairs], dtype=jnp.int32)
    ki_tbl = jnp.asarray([p[1] for p in pairs], dtype=jnp.int32)
    n_pairs = len(pairs)

    kernel = functools.partial(_flash_block_kernel, tq=tq, tkv=tkv, nk=nk)
    grid_spec = pltpu.PrefetchScalarGridSpec(
        num_scalar_prefetch=2,
        grid=(B, n_pairs),
        in_specs=[
            pl.BlockSpec((1, tq, H), lambda b, t, qi, ki: (b, qi[t], 0)),
            pl.BlockSpec((1, tkv, H), lambda b, t, qi, ki: (b, ki[t], 0)),
            pl.BlockSpec((1, tkv, H), lambda b, t, qi, ki: (b, ki[t], 0)),
            pl.BlockSpec((1, tq, H), lambda b, t, qi, ki: (b, qi[t], 0)),   # residual x
            pl.BlockSpec((H, H), lambda b, t, qi, ki: (0, 0)),              # wo resident
        ],
        out_specs=[
            pl.BlockSpec((1, tq, H), lambda b, t, qi, ki: (b, qi[t], 0)),
            pl.BlockSpec((1, tq, H), lambda b, t, qi, ki: (b, qi[t], 0)),
        ],
        scratch_shapes=[pltpu.VMEM((tq, 128), jnp.float32),   # m (lane-dense)
                        pltpu.VMEM((tq, 128), jnp.float32),   # l (lane-dense)
                        pltpu.VMEM((tq, H), jnp.float32)],    # acc
    )
    attn_out, resid = pl.pallas_call(
        kernel,
        out_shape=(jax.ShapeDtypeStruct((B, S, H), jnp.bfloat16),
                   jax.ShapeDtypeStruct((B, S, H), jnp.bfloat16)),
        grid_spec=grid_spec,
        compiler_params=_compiler_params(("parallel", "arbitrary")),
    )(qi_tbl, ki_tbl, q, k, v, x, wo)
    return attn_out, resid


# --------------------------------------------------------------------------- #
# Kernel 3: post-LN SiLU-gated MLP, I streamed in tiles with a f32 accumulator;
# residual add fused into the accumulator init, steering add (x + v*(1+mask))
# fused into the final-write epilogue (second output) when requested.
# --------------------------------------------------------------------------- #
def _mlp_kernel(h_ref, ln_ref, wg_ref, wu_ref, wd_ref, *rest,
                add_residual, steer):
    if steer:
        vec_ref, mask_ref, o_ref, os_ref, hn_sc, acc_sc = rest
    else:
        o_ref, hn_sc, acc_sc = rest

    @pl.when(pl.program_id(1) == 0)
    def _():
        h = h_ref[...].astype(jnp.float32)
        hn_sc[...] = _rmsnorm_f32(h, ln_ref[...]).astype(jnp.bfloat16)
        acc_sc[...] = h if add_residual else jnp.zeros_like(acc_sc)

    hn = hn_sc[...]
    g = jnp.dot(hn, wg_ref[...], preferred_element_type=jnp.float32)
    u = jnp.dot(hn, wu_ref[...], preferred_element_type=jnp.float32)
    act = (g * jax.nn.sigmoid(g) * u).astype(jnp.bfloat16)          # SiLU(g) * u
    acc_sc[...] += jnp.dot(act, wd_ref[...], preferred_element_type=jnp.float32)

    @pl.when(pl.program_id(1) == pl.num_programs(1) - 1)
    def _():
        out = acc_sc[...]
        o_ref[...] = out.astype(o_ref.dtype)
        if steer:
            os_ref[...] = (out + vec_ref[...] * (1.0 + mask_ref[...])
                           ).astype(os_ref.dtype)


def mlp_block(h2d, ln_w, wg, wu, wd, *, add_residual, steer_vec=None, mask=None):
    R, H = h2d.shape
    I = wg.shape[1]
    tm = _pick_tile(R, _ROW_TARGET, 16)
    ti = _pick_tile(I, _COL_TARGET, 128)
    steer = steer_vec is not None
    kernel = functools.partial(_mlp_kernel, add_residual=add_residual, steer=steer)

    in_specs = [
        pl.BlockSpec((tm, H), lambda r, i: (r, 0)),
        pl.BlockSpec((1, H), lambda r, i: (0, 0)),
        pl.BlockSpec((H, ti), lambda r, i: (0, i)),
        pl.BlockSpec((H, ti), lambda r, i: (0, i)),
        pl.BlockSpec((ti, H), lambda r, i: (i, 0)),
    ]
    inputs = [h2d, ln_w.reshape(1, H), wg, wu, wd]
    out_shapes = [jax.ShapeDtypeStruct((R, H), jnp.bfloat16)]
    out_specs = [pl.BlockSpec((tm, H), lambda r, i: (r, 0))]
    if steer:
        in_specs += [pl.BlockSpec((1, H), lambda r, i: (0, 0)),
                     pl.BlockSpec((tm, 1), lambda r, i: (r, 0))]
        inputs += [steer_vec.reshape(1, H).astype(jnp.float32), mask]
        out_shapes += [jax.ShapeDtypeStruct((R, H), jnp.bfloat16)]
        out_specs += [pl.BlockSpec((tm, H), lambda r, i: (r, 0))]

    out = pl.pallas_call(
        kernel,
        out_shape=tuple(out_shapes) if steer else out_shapes[0],
        grid=(R // tm, I // ti),
        in_specs=in_specs,
        out_specs=tuple(out_specs) if steer else out_specs[0],
        scratch_shapes=[pltpu.VMEM((tm, H), jnp.bfloat16),
                        pltpu.VMEM((tm, H), jnp.float32)],
        compiler_params=_compiler_params(("parallel", "arbitrary")),
    )(*inputs)
    return out


# --------------------------------------------------------------------------- #
# Kernel 4: fused RMSNorm + matmul for the logit-lens / unembedding path.
# RMSNorm recomputed per N tile (cheap VPU filler) so BOTH axes are "parallel"
# (megacore-friendly on v7x); weight streamed per V tile from HBM.
# --------------------------------------------------------------------------- #
def _norm_matmul_kernel(x_ref, ln_ref, w_ref, o_ref):
    x = x_ref[...].astype(jnp.float32)
    xn = _rmsnorm_f32(x, ln_ref[...]).astype(jnp.bfloat16)
    o_ref[...] = jnp.dot(xn, w_ref[...],
                         preferred_element_type=jnp.float32).astype(o_ref.dtype)


def _norm_matmul(x2d, ln_w, w, out_dtype):
    R, H = x2d.shape
    N = w.shape[1]
    tm = _pick_tile(R, _ROW_TARGET, 16)
    tn = _pick_tile(N, _COL_TARGET, 128)
    grid_n = N // tn
    w_spec = pl.BlockSpec((H, tn), lambda r, n: (0, n))
    if grid_n >= 4:
        # Deeper weight-stream pipelining hides HBM latency on low-bandwidth parts.
        w_spec = pl.BlockSpec((H, tn), lambda r, n: (0, n),
                              pipeline_mode=pl.Buffered(3))
    return pl.pallas_call(
        _norm_matmul_kernel,
        out_shape=jax.ShapeDtypeStruct((R, N), out_dtype),
        grid=(R // tm, grid_n),
        in_specs=[
            pl.BlockSpec((tm, H), lambda r, n: (r, 0)),
            pl.BlockSpec((1, H), lambda r, n: (0, 0)),
            w_spec,
        ],
        out_specs=pl.BlockSpec((tm, tn), lambda r, n: (r, n)),
        compiler_params=_compiler_params(("parallel", "parallel")),
    )(x2d, ln_w.reshape(1, H), w)


def norm_unembed(x, gamma, w_unembed, out_dtype=jnp.bfloat16):
    """x: (..., H) -> logits (..., V) via tiled fused RMSNorm + unembed."""
    H = x.shape[-1]
    V = w_unembed.shape[1]
    lead = x.shape[:-1]
    rows = math.prod(lead) if lead else 1
    out = _norm_matmul(x.reshape(rows, H), gamma, w_unembed, out_dtype)
    return out.reshape(*lead, V)


# ------------------------------ module analogue ----------------------------- #
class BlockOutputWrapperPallas:
    """JAX/Pallas analogue of BlockOutputWrapper + AttnWrapper hook."""

    def __init__(self, params):
        self.params = params
        self.attn_activations = None          # AttnWrapper.activations
        self.activations = None
        self.add_activations = None
        self.after_position = None
        self.save_internal_decodings = False
        self.calc_dot_product_with = None
        self.dot_products = []                # (token_id DeviceArray, dot DeviceArray)
        self.block_output_unembedded = None
        self.attn_out_unembedded = None
        self.intermediate_resid_unembedded = None
        self.mlp_out_unembedded = None

    def _attn_part(self, hidden_states):
        """Pre-norm attention + fused Wo/residual.  Returns (attn_out, x+attn_out)."""
        p = self.params
        B, S, H = hidden_states.shape
        x2d = hidden_states.reshape(B * S, H)
        scale = 1.0 / math.sqrt(H)
        q2d, k2d, v2d = qkv_proj(x2d, p["input_ln"], p["wq"], p["wk"], p["wv"],
                                 scale=scale)
        q = q2d.reshape(B, S, H)
        k = k2d.reshape(B, S, H)
        v = v2d.reshape(B, S, H)
        attn_out, attn_resid = flash_attention_block(q, k, v, hidden_states, p["wo"])
        return attn_out, attn_resid

    def forward(self, hidden_states, position_ids):
        p = self.params
        hidden_states = hidden_states.astype(jnp.bfloat16)
        B, S, H = hidden_states.shape

        attn_out, attn_resid = self._attn_part(hidden_states)
        self.attn_activations = attn_out                      # AttnWrapper hook
        attn_resid2d = attn_resid.reshape(B * S, H)

        steering = self.add_activations is not None
        if steering:
            if self.after_position is None:
                after_val = jnp.min(position_ids) - 1
            else:
                after_val = jnp.asarray(self.after_position, dtype=position_ids.dtype)
            mask = (position_ids > after_val).astype(jnp.float32).reshape(B * S, 1)
            block2d, steered2d = mlp_block(
                attn_resid2d, p["post_ln"], p["wg"], p["wu_mlp"], p["wd"],
                add_residual=True, steer_vec=self.add_activations, mask=mask)
            block_out = block2d.reshape(B, S, H)
            output = (steered2d.reshape(B, S, H),)
        else:
            block2d = mlp_block(attn_resid2d, p["post_ln"], p["wg"], p["wu_mlp"],
                                p["wd"], add_residual=True)
            block_out = block2d.reshape(B, S, H)
            output = (block_out,)

        self.activations = block_out                          # unsteered block output

        if self.calc_dot_product_with is not None:
            last = block_out[0, -1, :].astype(jnp.float32)
            logits = norm_unembed(last.reshape(1, 1, H), p["norm"], p["unembed"],
                                  out_dtype=jnp.float32)
            top_token_id = jnp.argmax(logits[0, 0])           # stays on device
            dot = jnp.vdot(last, self.calc_dot_product_with.astype(jnp.float32))
            # No mid-forward host sync: converted lazily via materialize_dot_products().
            self.dot_products.append((top_token_id, dot))

        if not self.save_internal_decodings:
            return output

        # Decode-path MLP (same synthetic block.mlp; no residual add).
        mlp_out = mlp_block(attn_resid2d, p["post_ln"], p["wg"], p["wu_mlp"],
                            p["wd"], add_residual=False).reshape(B, S, H)

        # Fused logit-lens (bf16 logits, f32 MXU accumulation): stack the four
        # activation tensors so the unembedding weight streams from HBM once per
        # row tile instead of four times.
        stacked = jnp.stack([output[0], attn_out, attn_resid, mlp_out], axis=0)
        decoded = norm_unembed(stacked, p["norm"], p["unembed"])   # (4, B, S, V) bf16
        self.block_output_unembedded = decoded[0]
        self.attn_out_unembedded = decoded[1]
        self.intermediate_resid_unembedded = decoded[2]
        self.mlp_out_unembedded = decoded[3]
        return output

    def materialize_dot_products(self):
        # TODO(synk): tokenizer.decode has no Pallas/JAX equivalent; emit token ids.
        return [(f"<tok_{int(t)}>", float(d)) for t, d in self.dot_products]

    def add(self, activations):
        self.add_activations = activations

    def reset(self):
        self.add_activations = None
        self.activations = None
        self.attn_activations = None
        self.after_position = None
        self.calc_dot_product_with = None
        self.dot_products = []


def init_params(key, H, V, I):
    ks = jax.random.split(key, 8)
    scale = 0.05

    def w(k, shape):
        return (jax.random.normal(k, shape, jnp.float32) * scale).astype(jnp.bfloat16)

    return {
        "input_ln": jnp.ones((H,), jnp.float32),
        "post_ln": jnp.ones((H,), jnp.float32),
        "norm": jnp.ones((H,), jnp.float32),               # final RMSNorm weight
        "wq": w(ks[0], (H, H)),
        "wk": w(ks[1], (H, H)),
        "wv": w(ks[2], (H, H)),
        "wo": w(ks[3], (H, H)),
        "wg": w(ks[4], (H, I)),
        "wu_mlp": w(ks[5], (H, I)),
        "wd": w(ks[6], (I, H)),
        "unembed": w(ks[7], (H, V)),                       # (H, V)
    }


if __name__ == "__main__":
    B, S, H, V, I = 2, 8, 32, 64, 64
    key = jax.random.PRNGKey(0)
    kp, kx, ka, kd = jax.random.split(key, 4)

    params = init_params(kp, H, V, I)
    wrapper = BlockOutputWrapperPallas(params)

    x = jax.random.normal(kx, (B, S, H), jnp.float32)
    position_ids = jnp.broadcast_to(jnp.arange(S, dtype=jnp.int32), (B, S))

    wrapper.add(jax.random.normal(ka, (H,), jnp.float32) * 0.1)
    wrapper.after_position = 3
    wrapper.calc_dot_product_with = jax.random.normal(kd, (H,), jnp.float32)
    wrapper.save_internal_decodings = True

    out = wrapper.forward(x, position_ids)

    jax.block_until_ready(out[0])
    jax.block_until_ready(wrapper.block_output_unembedded)
    jax.block_until_ready(wrapper.attn_out_unembedded)
    jax.block_until_ready(wrapper.intermediate_resid_unembedded)
    jax.block_until_ready(wrapper.mlp_out_unembedded)

    dps = wrapper.materialize_dot_products()    # host conversion only after the sync

    assert out[0].shape == (B, S, H)
    assert wrapper.block_output_unembedded.shape == (B, S, V)
    assert wrapper.attn_activations.shape == (B, S, H)
    assert wrapper.activations.shape == (B, S, H)
    assert len(dps) == 1
    assert bool(jnp.isfinite(wrapper.block_output_unembedded.astype(jnp.float32)).all())
    assert bool(jnp.isfinite(out[0].astype(jnp.float32)).all())

    print("KERNEL_OK")
</pallas_src>

<mosaic_0001>
module attributes {stable_mosaic.version = 11 : i64} {
  func.func @_qkv_kernel(%arg0: i32, %arg1: i32, %arg2: memref<16x32xbf16, #tpu.memory_space<vmem>>, %arg3: memref<1x32xf32, #tpu.memory_space<vmem>>, %arg4: memref<32x32xbf16, #tpu.memory_space<vmem>>, %arg5: memref<32x32xbf16, #tpu.memory_space<vmem>>, %arg6: memref<32x32xbf16, #tpu.memory_space<vmem>>, %arg7: memref<16x32xbf16, #tpu.memory_space<vmem>>, %arg8: memref<16x32xbf16, #tpu.memory_space<vmem>>, %arg9: memref<16x32xbf16, #tpu.memory_space<vmem>>) attributes {dimension_semantics = [#tpu.dimension_semantics<parallel>, #tpu.dimension_semantics<parallel>], iteration_bounds = array<i64: 1, 1>, scalar_prefetch = 0 : i64, scratch_operands = 0 : i64, tpu.core_type = #tpu.core_type<tc>, window_params = [{transform_indices = @transform_0, window_bounds = array<i64: 16, 32>}, {pipeline_mode = #tpu.pipeline_mode<synchronous>, transform_indices = @transform_1, window_bounds = array<i64: 1, 32>}, {transform_indices = @transform_2, window_bounds = array<i64: 32, 32>}, {transform_indices = @transform_3, window_bounds = array<i64: 32, 32>}, {transform_indices = @transform_4, window_bounds = array<i64: 32, 32>}, {transform_indices = @transform_5, window_bounds = array<i64: 16, 32>}, {transform_indices = @transform_6, window_bounds = array<i64: 16, 32>}, {transform_indices = @transform_7, window_bounds = array<i64: 16, 32>}]} {
    %c0 = arith.constant 0 : index
    %c0_0 = arith.constant 0 : index
    %0 = vector.load %arg2[%c0, %c0_0] : memref<16x32xbf16, #tpu.memory_space<vmem>>, vector<16x32xbf16>
    %1 = arith.extf %0 : vector<16x32xbf16> to vector<16x32xf32>
    %c0_1 = arith.constant 0 : index
    %c0_2 = arith.constant 0 : index
    %2 = vector.load %arg3[%c0_1, %c0_2] : memref<1x32xf32, #tpu.memory_space<vmem>>, vector<1x32xf32>
    %3 = arith.mulf %1, %1 : vector<16x32xf32>
    %cst = arith.constant dense<0.000000e+00> : vector<16xf32>
    %4 = vector.multi_reduction <add>, %3, %cst [1] : vector<16x32xf32> to vector<16xf32>
    %5 = vector.shape_cast %4 : vector<16xf32> to vector<16x1xf32>
    %cst_3 = arith.constant 3.200000e+01 : f32
    %6 = vector.broadcast %cst_3 : f32 to vector<16x1xf32>
    %7 = arith.divf %5, %6 : vector<16x1xf32>
    %cst_4 = arith.constant 9.99999997E-7 : f32
    %8 = vector.broadcast %cst_4 : f32 to vector<16x1xf32>
    %9 = arith.addf %7, %8 : vector<16x1xf32>
    %10 = math.rsqrt %9 : vector<16x1xf32>
    %11 = vector.broadcast %10 : vector<16x1xf32> to vector<16x32xf32>
    %12 = arith.mulf %1, %11 : vector<16x32xf32>
    %13 = vector.broadcast %2 : vector<1x32xf32> to vector<16x32xf32>
    %14 = arith.mulf %12, %13 : vector<16x32xf32>
    %15 = arith.truncf %14 : vector<16x32xf32> to vector<16x32xbf16>
    %c0_5 = arith.constant 0 : index
    %c0_6 = arith.constant 0 : index
    %16 = vector.load %arg4[%c0_5, %c0_6] : memref<32x32xbf16, #tpu.memory_space<vmem>>, vector<32x32xbf16>
    %cst_7 = arith.constant dense<0.000000e+00> : vector<16x32xf32>
    %17 = tpu.matmul %15, %16, %cst_7 {dimension_numbers = #tpu.dot_dimension_numbers<[1], [0], [0], [1], [0, 0, 1, 1], [], []>} : vector<16x32xbf16>, vector<32x32xbf16>, vector<16x32xf32> -> vector<16x32xf32>
    %cst_8 = arith.constant 0.176776692 : f32
    %18 = vector.broadcast %cst_8 : f32 to vector<16x32xf32>
    %19 = arith.mulf %17, %18 : vector<16x32xf32>
    %20 = arith.truncf %19 : vector<16x32xf32> to vector<16x32xbf16>
    %c0_9 = arith.constant 0 : index
    %c0_10 = arith.constant 0 : index
    %21 = vector.load %arg7[%c0_9, %c0_10] : memref<16x32xbf16, #tpu.memory_space<vmem>>, vector<16x32xbf16>
    tpu.vector_store %arg7[%c0_9, %c0_10], %20 {strides = array<i32>} : memref<16x32xbf16, #tpu.memory_space<vmem>>, vector<16x32xbf16>,
    %c0_11 = arith.constant 0 : index
    %c0_12 = arith.constant 0 : index
    %22 = vector.load %arg5[%c0_11, %c0_12] : memref<32x32xbf16, #tpu.memory_space<vmem>>, vector<32x32xbf16>
    %cst_13 = arith.constant dense<0.000000e+00> : vector<16x32xf32>
    %23 = tpu.matmul %15, %22, %cst_13 {dimension_numbers = #tpu.dot_dimension_numbers<[1], [0], [0], [1], [0, 0, 1, 1], [], []>} : vector<16x32xbf16>, vector<32x32xbf16>, vector<16x32xf32> -> vector<16x32xf32>
    %24 = arith.truncf %23 : vector<16x32xf32> to vector<16x32xbf16>
    %c0_14 = arith.constant 0 : index
    %c0_15 = arith.constant 0 : index
    %25 = vector.load %arg8[%c0_14, %c0_15] : memref<16x32xbf16, #tpu.memory_space<vmem>>, vector<16x32xbf16>
    tpu.vector_store %arg8[%c0_14, %c0_15], %24 {strides = array<i32>} : memref<16x32xbf16, #tpu.memory_space<vmem>>, vector<16x32xbf16>,
    %c0_16 = arith.constant 0 : index
    %c0_17 = arith.constant 0 : index
    %26 = vector.load %arg6[%c0_16, %c0_17] : memref<32x32xbf16, #tpu.memory_space<vmem>>, vector<32x32xbf16>
    %cst_18 = arith.constant dense<0.000000e+00> : vector<16x32xf32>
    %27 = tpu.matmul %15, %26, %cst_18 {dimension_numbers = #tpu.dot_dimension_numbers<[1], [0], [0], [1], [0, 0, 1, 1], [], []>} : vector<16x32xbf16>, vector<32x32xbf16>, vector<16x32xf32> -> vector<16x32xf32>
    %28 = arith.truncf %27 : vector<16x32xf32> to vector<16x32xbf16>
    %c0_19 = arith.constant 0 : index
    %c0_20 = arith.constant 0 : index
    %29 = vector.load %arg9[%c0_19, %c0_20] : memref<16x32xbf16, #tpu.memory_space<vmem>>, vector<16x32xbf16>
    tpu.vector_store %arg9[%c0_19, %c0_20], %28 {strides = array<i32>} : memref<16x32xbf16, #tpu.memory_space<vmem>>, vector<16x32xbf16>,
    return
  }
  func.func @transform_0(%arg0: i32, %arg1: i32) -> (i32, i32) {
    %c0_i32 = arith.constant 0 : i32
    %c0_i32_0 = arith.constant 0 : i32
    return %arg0, %c0_i32 : i32, i32
  }
  func.func @transform_1(%arg0: i32, %arg1: i32) -> (i32, i32) {
    %c0_i32 = arith.constant 0 : i32
    %c0_i32_0 = arith.constant 0 : i32
    %c0_i32_1 = arith.constant 0 : i32
    return %c0_i32, %c0_i32_0 : i32, i32
  }
  func.func @transform_2(%arg0: i32, %arg1: i32) -> (i32, i32) {
    %c0_i32 = arith.constant 0 : i32
    %c0_i32_0 = arith.constant 0 : i32
    return %c0_i32, %arg1 : i32, i32
  }
  func.func @transform_3(%arg0: i32, %arg1: i32) -> (i32, i32) {
    %c0_i32 = arith.constant 0 : i32
    %c0_i32_0 = arith.constant 0 : i32
    return %c0_i32, %arg1 : i32, i32
  }
  func.func @transform_4(%arg0: i32, %arg1: i32) -> (i32, i32) {
    %c0_i32 = arith.constant 0 : i32
    %c0_i32_0 = arith.constant 0 : i32
    return %c0_i32, %arg1 : i32, i32
  }
  func.func @transform_5(%arg0: i32, %arg1: i32) -> (i32, i32) {
    %c0_i32 = arith.constant 0 : i32
    return %arg0, %arg1 : i32, i32
  }
  func.func @transform_6(%arg0: i32, %arg1: i32) -> (i32, i32) {
    %c0_i32 = arith.constant 0 : i32
    return %arg0, %arg1 : i32, i32
  }
  func.func @transform_7(%arg0: i32, %arg1: i32) -> (i32, i32) {
    %c0_i32 = arith.constant 0 : i32
    return %arg0, %arg1 : i32, i32
  }
}

</mosaic_0001>

<llo_original>
// kernel: tpu_custom_call.1
$region0: #{tpu_custom_call.1}
  #allocation0 [shape = 'u32[]', space=smem, size = 0x4, offset = 0x4, fixed_abs, tag = 'smem constant byte address 0x4 - core index']
  #allocation1 [shape = 'u32[144,128]{1,0:T(1,128)}', space=vmem, size = 0x12000, scoped, tag = 'internal scratch']
  %s0 = inlined_call_operand.hbm [shape: bf16[16,32], index: 0, kind: input, shape index: {}]
  %s1 = inlined_call_operand.vmem [shape: f32[1,32], index: 1, kind: input, shape index: {}]
  %s2 = inlined_call_operand.hbm [shape: bf16[32,32], index: 2, kind: input, shape index: {}]
  %s3 = inlined_call_operand.hbm [shape: bf16[32,32], index: 3, kind: input, shape index: {}]
  %s4 = inlined_call_operand.hbm [shape: bf16[32,32], index: 4, kind: input, shape index: {}]
  %s5 = inlined_call_operand.hbm [shape: bf16[16,32], index: 5, kind: output, shape index: {0}]
  %s6 = inlined_call_operand.hbm [shape: bf16[16,32], index: 6, kind: output, shape index: {1}]
  %s7 = inlined_call_operand.hbm [shape: bf16[16,32], index: 7, kind: output, shape index: {2}]
  %8 = xla_tuple %s5, %s6, %s7
  %s9 = sld [smem:[#allocation0]]
  $region62: #{tpu_custom_call.1} parent=0
    _
  %s11 = ssub.s32 1, %s9
  %s12 = scalar_select 0, %s11, %s9
  $region1: #{tpu_custom_call.1} parent=0
    #allocation2 [shape = 'u8[4096]{0}', space=vmem, size = 0x1000, scoped, tag = 'input window, operand 0, single buffered']
    #allocation3 [shape = 's32[1]{0}', space=sflag, size = 0x4, scoped, tag = 'scoped memory for tpu_custom_call.1']
    #allocation4 [shape = 's32[1]{0}', space=sflag, size = 0x4, scoped, tag = 'scoped memory for tpu_custom_call.1']
    #allocation5 [shape = 'u8[8192]{0}', space=vmem, size = 0x2000, scoped, tag = 'input window, operand 2, single buffered']
    #allocation6 [shape = 's32[1]{0}', space=sflag, size = 0x4, scoped, tag = 'scoped memory for tpu_custom_call.1']
    #allocation7 [shape = 'u8[8192]{0}', space=vmem, size = 0x2000, scoped, tag = 'input window, operand 3, single buffered']
    #allocation8 [shape = 'u8[8192]{0}', space=vmem, size = 0x2000, scoped, tag = 'input window, operand 4, single buffered']
    #allocation9 [shape = 's32[1]{0}', space=sflag, size = 0x4, scoped, tag = 'scoped memory for tpu_custom_call.1']
    #allocation10 [shape = 'u8[4096]{0}', space=vmem, size = 0x1000, scoped, tag = 'output window, operand 0, single buffered']
    #allocation11 [shape = 'u8[4096]{0}', space=vmem, size = 0x1000, scoped, tag = 'output window, operand 1, single buffered']
    #allocation12 [shape = 's32[1]{0}', space=sflag, size = 0x4, scoped, tag = 'scoped memory for tpu_custom_call.1']
    #allocation13 [shape = 'u8[4096]{0}', space=vmem, size = 0x1000, scoped, tag = 'output window, operand 2, single buffered']
    %13 = vsyncpa [#allocation3], 0
    %14 = vsyncpa [#allocation6], 0
    %15 = vsyncpa [#allocation9], 0
    %16 = vsyncpa [#allocation4], 0
    %17 = vsyncpa [#allocation12], 0
    // Predicated region
    $region2: #{tpu_custom_call.1} parent=1 // pred_check
      _
    $region3: #{tpu_custom_call.1} parent=1 // pred_check_branch
      %19 = sbr.rel (0) target = $region5
    $region4: #{tpu_custom_call.1} parent=1 // pred_region
      %s21 = ssub.s32 128, 128
      %22 = vsyncadd [#allocation3], %s21
      %s23 = sshll.u32 [#allocation2], 4
      %s24 = int_to_ptr.vmem [resolvable:$true] %s23
      %29 = dma.hbm_to_vmem [thread:$0]  %s0, 128, %s24, [#allocation3], 64, 64, 4
    $region5: #{tpu_custom_call.1} parent=1 // pred_fallthru
      _
    // Predicated region
    $region6: #{tpu_custom_call.1} parent=1 // pred_check
      _
    $region7: #{tpu_custom_call.1} parent=1 // pred_check_branch
      %31 = sbr.rel (0) target = $region9
    $region8: #{tpu_custom_call.1} parent=1 // pred_region
      _
    $region9: #{tpu_custom_call.1} parent=1 // pred_fallthru
      _
    // Predicated region
    $region10: #{tpu_custom_call.1} parent=1 // pred_check
      _
    $region11: #{tpu_custom_call.1} parent=1 // pred_check_branch
      %33 = sbr.rel (0) target = $region13
    $region12: #{tpu_custom_call.1} parent=1 // pred_region
      %s35 = ssub.s32 256, 256
      %36 = vsyncadd [#allocation6], %s35
      %s37 = sshll.u32 [#allocation5], 4
      %s38 = int_to_ptr.vmem [resolvable:$true] %s37
      %43 = dma.hbm_to_vmem [thread:$0]  %s2, 256, %s38, [#allocation6], 64, 64, 4
    $region13: #{tpu_custom_call.1} parent=1 // pred_fallthru
      _
    // Predicated region
    $region14: #{tpu_custom_call.1} parent=1 // pred_check
      _
    $region15: #{tpu_custom_call.1} parent=1 // pred_check_branch
      %45 = sbr.rel (0) target = $region17
    $region16: #{tpu_custom_call.1} parent=1 // pred_region
      %s47 = ssub.s32 256, 256
      %48 = vsyncadd [#allocation6], %s47
      %s49 = sshll.u32 [#allocation7], 4
      %s50 = int_to_ptr.vmem [resolvable:$true] %s49
      %55 = dma.hbm_to_vmem [thread:$0]  %s3, 256, %s50, [#allocation6], 64, 64, 4
    $region17: #{tpu_custom_call.1} parent=1 // pred_fallthru
      _
    // Predicated region
    $region18: #{tpu_custom_call.1} parent=1 // pred_check
      _
    $region19: #{tpu_custom_call.1} parent=1 // pred_check_branch
      %57 = sbr.rel (0) target = $region21
    $region20: #{tpu_custom_call.1} parent=1 // pred_region
      %s59 = ssub.s32 256, 256
      %60 = vsyncadd [#allocation9], %s59
      %s61 = sshll.u32 [#allocation8], 4
      %s62 = int_to_ptr.vmem [resolvable:$true] %s61
      %67 = dma.hbm_to_vmem [thread:$0]  %s4, 256, %s62, [#allocation9], 64, 64, 4
    $region21: #{tpu_custom_call.1} parent=1 // pred_fallthru
      _
    // Predicated region
    $region22: #{tpu_custom_call.1} parent=1 // pred_check
      _
    $region23: #{tpu_custom_call.1} parent=1 // pred_check_branch
      %69 = sbr.rel (0) target = $region25
    $region24: #{tpu_custom_call.1} parent=1 // pred_region
      %70 = dma.done [#allocation3], 128
    $region25: #{tpu_custom_call.1} parent=1 // pred_fallthru
      _
    // Predicated region
    $region26: #{tpu_custom_call.1} parent=1 // pred_check
      _
    $region27: #{tpu_custom_call.1} parent=1 // pred_check_branch
      %72 = sbr.rel (0) target = $region29
    $region28: #{tpu_custom_call.1} parent=1 // pred_region
      %73 = dma.done [#allocation6], 256
    $region29: #{tpu_custom_call.1} parent=1 // pred_fallthru
      _
    // Predicated region
    $region30: #{tpu_custom_call.1} parent=1 // pred_check
      _
    $region31: #{tpu_custom_call.1} parent=1 // pred_check_branch
      %75 = sbr.rel (0) target = $region33
    $region32: #{tpu_custom_call.1} parent=1 // pred_region
      %76 = dma.done [#allocation6], 256
    $region33: #{tpu_custom_call.1} parent=1 // pred_fallthru
      _
    // Predicated region
    $region34: #{tpu_custom_call.1} parent=1 // pred_check
      _
    $region35: #{tpu_custom_call.1} parent=1 // pred_check_branch
      %78 = sbr.rel (0) target = $region37
    $region36: #{tpu_custom_call.1} parent=1 // pred_region
      %79 = dma.done [#allocation9], 256
    $region37: #{tpu_custom_call.1} parent=1 // pred_fallthru
      _
    %v81 = vld [vmem:[#allocation2] sm:$0xf]
    %v82 = vld [vmem:[#allocation2 + $0x4] sm:$0xf]
    %v83 = vunpack.c.l.bf16 %v81
    %v84 = vunpack.c.l.bf16 %v82
    %v85 = vld [vmem:[%s1] sm:$0x1]
    %v86 = vmul.f32 %v83, %v83
    %v87 = vmul.f32 %v84, %v84
    %vm88 = vcmask 261120
    %v89 = vsel %vm88, %v86, 0.0
    %90 = vadd.xlane.f32.xlu0 %v89
    %v91 = vpop.xlane.xlu0 %90
    %v92 = vsel %vm88, %v87, 0.0
    %93 = vadd.xlane.f32.xlu0 %v92
    %v94 = vpop.xlane.xlu0 %93
    %v95 = vrcp.pop 32.0
    %v96 = vmul.f32 %v91, %v95
    %v97 = vmul.f32 %v94, %v95
    %v98 = vadd.f32 %v96, 1e-06
    %v99 = vadd.f32 %v97, 1e-06
    %v100 = vrsqrt.pop %v98
    %v101 = vrsqrt.pop %v99
    %v102 = vmul.f32 %v83, %v100
    %v103 = vmul.f32 %v84, %v101
    %v105 = vlaneseq
    %v106 = vshrl.u32 %v105, 7
    %v107 = vsub.s32 0, %v106
    %v108 = vrot.slane %v85, %v107
    %v110 = vmul.f32 %v102, %v108
    %v111 = vmul.f32 %v103, %v108
    %v112 = vpack.c.bf16 %v111, %v110
    %v113 = vld [vmem:[#allocation5] sm:$0xf]
    %v114 = vld [vmem:[#allocation5 + $0x4] sm:$0xf]
    %v115 = vld [vmem:[#allocation5 + $0x8] sm:$0xf]
    %v116 = vld [vmem:[#allocation5 + $0xc] sm:$0xf]
    %v121 = vunpack.c.l.b16 %v113
    %v122 = vunpack.c.l.b16 %v114
    %v123 = vunpack.c.l.b16 %v115
    %v124 = vunpack.c.l.b16 %v116
    %v125 = vpack.c.b16 %v122, %v121
    %v126 = vpack.c.b16 %v124, %v123
    %v130 = vsel %vm88, %v112, 0
    %132 = vmatprep.subr.bf16.mxu0 0
    %133 = vmatpush1.bf16.msra.mxu0 %v125
    %134 = vmatprep.subr.bf16.mxu0 0
    %135 = vmatpush1.bf16.msra.mxu0 %v126
    %136 = vmatprep.subr.bf16.mxu0 0
    %137 = vmatpush1.bf16.msra.mxu0 0
    %138 = vmatprep.subr.bf16.mxu0 0
    %139 = vmatpush1.bf16.msra.mxu0 0
    %140 = vmatprep.subr.bf16.mxu0 0
    %141 = vmatpush1.bf16.msra.mxu0 0
    %142 = vmatprep.subr.bf16.mxu0 0
    %143 = vmatpush1.bf16.msra.mxu0 0
    %144 = vmatprep.subr.bf16.mxu0 0
    %145 = vmatpush1.bf16.msra.mxu0 0
    %146 = vmatprep.subr.bf16.mxu0 0
    %147 = vmatpush1.bf16.msra.mxu0 0
    %148 = vmatprep.subr.bf16.mxu0 0
    %149 = vmatpush1.bf16.msra.mxu0 0
    %150 = vmatprep.subr.bf16.mxu0 0
    %151 = vmatpush1.bf16.msra.mxu0 0
    %152 = vmatprep.subr.bf16.mxu0 0
    %153 = vmatpush1.bf16.msra.mxu0 0
    %154 = vmatprep.subr.bf16.mxu0 0
    %155 = vmatpush1.bf16.msra.mxu0 0
    %156 = vmatprep.subr.bf16.mxu0 0
    %157 = vmatpush1.bf16.msra.mxu0 0
    %158 = vmatprep.subr.bf16.mxu0 0
    %159 = vmatpush1.bf16.msra.mxu0 0
    %160 = vmatprep.subr.bf16.mxu0 0
    %161 = vmatpush1.bf16.msra.mxu0 0
    %162 = vmatprep.subr.bf16.mxu0 0
    %163 = vmatpush1.bf16.msra.mxu0 0
    %164 = vmatprep.mubr.bf16.mxu0 0
    %165 = vmatmul.mubr.bf16.gmra.mrb[0].mxu0 %v130
    %v166 = vpop.f32.mrb[0].mxu0
    %v167 = vadd.f32 0.0, %v166
    %v168 = vpop.f32.mrb[0].mxu0
    %v169 = vpop.f32.mrb[0].mxu0
    %v170 = vadd.f32 0.0, %v169
    %v171 = vpop.f32.mrb[0].mxu0
    %172 = vdwg.mxu0
    %v173 = vmul.f32 %v167, 0.17677669
    %v174 = vmul.f32 %v170, 0.17677669
    %v175 = vpack.c.bf16 %v174, %v173
    %v177 = vunpack.c.l.b16 %v175
    %v178 = vunpack.c.h.b16 %v175
    %v179 = vpack.c.b16 %v177, %v177
    %v180 = vpack.c.b16 %v178, %v178
    %vm183 = vcmask 257024
    %184 = vst.msk [vmem:[#allocation10] sm:$0xf] %vm183, %v179
    %185 = vst.msk [vmem:[#allocation10 + $0x4] sm:$0xf] %vm183, %v180
    %v186 = vld [vmem:[#allocation7] sm:$0xf]
    %v187 = vld [vmem:[#allocation7 + $0x4] sm:$0xf]
    %v188 = vld [vmem:[#allocation7 + $0x8] sm:$0xf]
    %v189 = vld [vmem:[#allocation7 + $0xc] sm:$0xf]
    %v194 = vunpack.c.l.b16 %v186
    %v195 = vunpack.c.l.b16 %v187
    %v196 = vunpack.c.l.b16 %v188
    %v197 = vunpack.c.l.b16 %v189
    %v198 = vpack.c.b16 %v195, %v194
    %v199 = vpack.c.b16 %v197, %v196
    %202 = vmatprep.subr.bf16.mxu0 0
    %203 = vmatpush1.bf16.msra.mxu0 %v198
    %204 = vmatprep.subr.bf16.mxu0 0
    %205 = vmatpush1.bf16.msra.mxu0 %v199
    %206 = vmatprep.subr.bf16.mxu0 0
    %207 = vmatpush1.bf16.msra.mxu0 0
    %208 = vmatprep.subr.bf16.mxu0 0
    %209 = vmatpush1.bf16.msra.mxu0 0
    %210 = vmatprep.subr.bf16.mxu0 0
    %211 = vmatpush1.bf16.msra.mxu0 0
    %212 = vmatprep.subr.bf16.mxu0 0
    %213 = vmatpush1.bf16.msra.mxu0 0
    %214 = vmatprep.subr.bf16.mxu0 0
    %215 = vmatpush1.bf16.msra.mxu0 0
    %216 = vmatprep.subr.bf16.mxu0 0
    %217 = vmatpush1.bf16.msra.mxu0 0
    %218 = vmatprep.subr.bf16.mxu0 0
    %219 = vmatpush1.bf16.msra.mxu0 0
    %220 = vmatprep.subr.bf16.mxu0 0
    %221 = vmatpush1.bf16.msra.mxu0 0
    %222 = vmatprep.subr.bf16.mxu0 0
    %223 = vmatpush1.bf16.msra.mxu0 0
    %224 = vmatprep.subr.bf16.mxu0 0
    %225 = vmatpush1.bf16.msra.mxu0 0
    %226 = vmatprep.subr.bf16.mxu0 0
    %227 = vmatpush1.bf16.msra.mxu0 0
    %228 = vmatprep.subr.bf16.mxu0 0
    %229 = vmatpush1.bf16.msra.mxu0 0
    %230 = vmatprep.subr.bf16.mxu0 0
    %231 = vmatpush1.bf16.msra.mxu0 0
    %232 = vmatprep.subr.bf16.mxu0 0
    %233 = vmatpush1.bf16.msra.mxu0 0
    %234 = vmatprep.mubr.bf16.mxu0 0
    %235 = vmatmul.mubr.bf16.gmra.mrb[0].mxu0 %v130
    %v236 = vpop.f32.mrb[0].mxu0
    %v237 = vadd.f32 0.0, %v236
    %v238 = vpop.f32.mrb[0].mxu0
    %v239 = vpop.f32.mrb[0].mxu0
    %v240 = vadd.f32 0.0, %v239
    %v241 = vpop.f32.mrb[0].mxu0
    %242 = vdwg.mxu0
    %v243 = vpack.c.bf16 %v240, %v237
    %v245 = vunpack.c.l.b16 %v243
    %v246 = vunpack.c.h.b16 %v243
    %v247 = vpack.c.b16 %v245, %v245
    %v248 = vpack.c.b16 %v246, %v246
    %251 = vst.msk [vmem:[#allocation11] sm:$0xf] %vm183, %v247
    %252 = vst.msk [vmem:[#allocation11 + $0x4] sm:$0xf] %vm183, %v248
    %v253 = vld [vmem:[#allocation8] sm:$0xf]
    %v254 = vld [vmem:[#allocation8 + $0x4] sm:$0xf]
    %v255 = vld [vmem:[#allocation8 + $0x8] sm:$0xf]
    %v256 = vld [vmem:[#allocation8 + $0xc] sm:$0xf]
    %v261 = vunpack.c.l.b16 %v253
    %v262 = vunpack.c.l.b16 %v254
    %v263 = vunpack.c.l.b16 %v255
    %v264 = vunpack.c.l.b16 %v256
    %v265 = vpack.c.b16 %v262, %v261
    %v266 = vpack.c.b16 %v264, %v263
    %269 = vmatprep.subr.bf16.mxu0 0
    %270 = vmatpush1.bf16.msra.mxu0 %v265
    %271 = vmatprep.subr.bf16.mxu0 0
    %272 = vmatpush1.bf16.msra.mxu0 %v266
    %273 = vmatprep.subr.bf16.mxu0 0
    %274 = vmatpush1.bf16.msra.mxu0 0
    %275 = vmatprep.subr.bf16.mxu0 0
    %276 = vmatpush1.bf16.msra.mxu0 0
    %277 = vmatprep.subr.bf16.mxu0 0
    %278 = vmatpush1.bf16.msra.mxu0 0
    %279 = vmatprep.subr.bf16.mxu0 0
    %280 = vmatpush1.bf16.msra.mxu0 0
    %281 = vmatprep.subr.bf16.mxu0 0
    %282 = vmatpush1.bf16.msra.mxu0 0
    %283 = vmatprep.subr.bf16.mxu0 0
    %284 = vmatpush1.bf16.msra.mxu0 0
    %285 = vmatprep.subr.bf16.mxu0 0
    %286 = vmatpush1.bf16.msra.mxu0 0
    %287 = vmatprep.subr.bf16.mxu0 0
    %288 = vmatpush1.bf16.msra.mxu0 0
    %289 = vmatprep.subr.bf16.mxu0 0
    %290 = vmatpush1.bf16.msra.mxu0 0
    %291 = vmatprep.subr.bf16.mxu0 0
    %292 = vmatpush1.bf16.msra.mxu0 0
    %293 = vmatprep.subr.bf16.mxu0 0
    %294 = vmatpush1.bf16.msra.mxu0 0
    %295 = vmatprep.subr.bf16.mxu0 0
    %296 = vmatpush1.bf16.msra.mxu0 0
    %297 = vmatprep.subr.bf16.mxu0 0
    %298 = vmatpush1.bf16.msra.mxu0 0
    %299 = vmatprep.subr.bf16.mxu0 0
    %300 = vmatpush1.bf16.msra.mxu0 0
    %301 = vmatprep.mubr.bf16.mxu0 0
    %302 = vmatmul.mubr.bf16.gmra.mrb[0].mxu0 %v130
    %v303 = vpop.f32.mrb[0].mxu0
    %v304 = vadd.f32 0.0, %v303
    %v305 = vpop.f32.mrb[0].mxu0
    %v306 = vpop.f32.mrb[0].mxu0
    %v307 = vadd.f32 0.0, %v306
    %v308 = vpop.f32.mrb[0].mxu0
    %309 = vdwg.mxu0
    %v310 = vpack.c.bf16 %v307, %v304
    %v312 = vunpack.c.l.b16 %v310
    %v313 = vunpack.c.h.b16 %v310
    %v314 = vpack.c.b16 %v312, %v312
    %v315 = vpack.c.b16 %v313, %v313
    %318 = vst.msk [vmem:[#allocation13] sm:$0xf] %vm183, %v314
    %319 = vst.msk [vmem:[#allocation13 + $0x4] sm:$0xf] %vm183, %v315
    // Predicated region
    $region38: #{tpu_custom_call.1} parent=1 // pred_check
      _
    $region39: #{tpu_custom_call.1} parent=1 // pred_check_branch
      %321 = sbr.rel (0) target = $region41
    $region40: #{tpu_custom_call.1} parent=1 // pred_region
      %s323 = ssub.s32 128, 128
      %324 = vsyncadd [#allocation4], %s323
      %s325 = sshll.u32 [#allocation10], 4
      %s326 = int_to_ptr.vmem [resolvable:$true] %s325
      %331 = dma.vmem_to_hbm [thread:$0]  %s326, 128, %s5, [#allocation4], 64, 64, 4
    $region41: #{tpu_custom_call.1} parent=1 // pred_fallthru
      _
    // Predicated region
    $region42: #{tpu_custom_call.1} parent=1 // pred_check
      _
    $region43: #{tpu_custom_call.1} parent=1 // pred_check_branch
      %333 = sbr.rel (0) target = $region45
    $region44: #{tpu_custom_call.1} parent=1 // pred_region
      %s335 = ssub.s32 128, 128
      %336 = vsyncadd [#allocation12], %s335
      %s337 = sshll.u32 [#allocation11], 4
      %s338 = int_to_ptr.vmem [resolvable:$true] %s337
      %343 = dma.vmem_to_hbm [thread:$0]  %s338, 128, %s6, [#allocation12], 64, 64, 4
    $region45: #{tpu_custom_call.1} parent=1 // pred_fallthru
      _
    // Predicated region
    $region46: #{tpu_custom_call.1} parent=1 // pred_check
      _
    $region47: #{tpu_custom_call.1} parent=1 // pred_check_branch
      %345 = sbr.rel (0) target = $region49
    $region48: #{tpu_custom_call.1} parent=1 // pred_region
      %s347 = ssub.s32 128, 128
      %348 = vsyncadd [#allocation12], %s347
      %s349 = sshll.u32 [#allocation13], 4
      %s350 = int_to_ptr.vmem [resolvable:$true] %s349
      %355 = dma.vmem_to_hbm [thread:$0]  %s350, 128, %s7, [#allocation12], 64, 64, 4
    $region49: #{tpu_custom_call.1} parent=1 // pred_fallthru
      _
    // Predicated region
    $region50: #{tpu_custom_call.1} parent=1 // pred_check
      _
    $region51: #{tpu_custom_call.1} parent=1 // pred_check_branch
      %357 = sbr.rel (0) target = $region53
    $region52: #{tpu_custom_call.1} parent=1 // pred_region
      %358 = dma.done [#allocation4], 128
    $region53: #{tpu_custom_call.1} parent=1 // pred_fallthru
      _
    // Predicated region
    $region54: #{tpu_custom_call.1} parent=1 // pred_check
      _
    $region55: #{tpu_custom_call.1} parent=1 // pred_check_branch
      %360 = sbr.rel (0) target = $region57
    $region56: #{tpu_custom_call.1} parent=1 // pred_region
      %361 = dma.done [#allocation12], 128
    $region57: #{tpu_custom_call.1} parent=1 // pred_fallthru
      _
    // Predicated region
    $region58: #{tpu_custom_call.1} parent=1 // pred_check
      _
    $region59: #{tpu_custom_call.1} parent=1 // pred_check_branch
      %363 = sbr.rel (0) target = $region61
    $region60: #{tpu_custom_call.1} parent=1 // pred_region
      %364 = dma.done [#allocation12], 128
    $region61: #{tpu_custom_call.1} parent=1 // pred_fallthru
      _
    %365 = vsyncpa [#allocation3], 1
    %366 = vsyncpa [#allocation6], 1
    %367 = vsyncpa [#allocation9], 1
    %368 = vsyncpa [#allocation4], 1
    %369 = vsyncpa [#allocation12], 1

</llo_original>
